<compile_context>
chip_gen: v6e
topology: v6e:2x2x1
jax: 0.10.0
libtpu: 0.0.40
codegen_flags: <defaults>
</compile_context>

<pallas_src>
import functools

import jax
import jax.numpy as jnp
from jax.experimental import pallas as pl
from jax.experimental.pallas import tpu as pltpu


def _round_up(x, m):
    return ((x + m - 1) // m) * m


def _cdiv(a, b):
    return -(-a // b)


def _choose_tiling(B, C, S, max_block_bytes, itemsize):
    """Pick (b_blk, s_blk) for the (B*C, S) view; one x block is (b_blk*C, s_blk)."""
    bytes_per_batch = C * S * itemsize
    # Prefer full-S blocks (single spatial step, longest contiguous DMAs): largest 8-aligned
    # batch tile, capped at 128 (MXU M-dim), that fits the per-buffer budget.
    b_fit = (max_block_bytes // bytes_per_batch // 8) * 8
    if b_fit >= 8:
        b_blk = min(b_fit, 128)
        return (B, S) if b_blk >= B else (b_blk, S)
    # Full S does not fit even 8 batches: tile the spatial axis (multiples of 128 lanes) and
    # keep the batch tile at 8 (or all of B when B < 8, so the block equals the full row dim).
    b_blk = B if B <= 8 else 8
    rows = b_blk * C
    s_blk = (max_block_bytes // (rows * itemsize)) // 128 * 128
    s_blk = max(128, min(s_blk, _round_up(S, 128)))
    return b_blk, s_blk


def _make_ms_mlp_kernel(num_layers, b_blk, C, S, s_blk, multi_step, ragged):
    """Streamed spatial sum over (B*C, S) blocks; MLP head once per batch tile."""
    inv_s = 1.0 / float(S)

    def kernel(x_ref, *refs):
        acc_ref = refs[-1]                                  # (b_blk*C, 1) f32 scratch
        out_ref = refs[-2]                                  # (b_blk, out_pad)
        param_refs = refs[:-2]                              # w0, b0, w1, b1, ...
        si = pl.program_id(1)

        # ---- streamed spatial (partial) sum: the HBM-bound bulk of the op --------------
        x = x_ref[...].astype(jnp.float32)                  # (b_blk*C, s_blk)
        if ragged:                                          # mask out-of-range tail columns
            col = si * s_blk + jax.lax.broadcasted_iota(jnp.int32, x.shape, 1)
            x = jnp.where(col < S, x, 0.0)
        part = jnp.sum(x, axis=-1, keepdims=True)           # (b_blk*C, 1)

        if multi_step:
            @pl.when(si == 0)
            def _():
                acc_ref[...] = part

            @pl.when(si > 0)
            def _():
                acc_ref[...] = acc_ref[...] + part
        else:                                               # single spatial step: no carry
            acc_ref[...] = part

        # ---- MLP head, once per batch tile ----------------------------------------------
        @pl.when(si == pl.num_programs(1) - 1)
        def _():
            # Gather row sums into a (b_blk, C) matrix of spatial means: channel c of batch b
            # lives at row b*C + c of the row-major (B*C, S) view -> sublane stride C.
            lane = jax.lax.broadcasted_iota(jnp.int32, (b_blk, C), 1)
            h = jnp.zeros((b_blk, C), jnp.float32)
            for c in range(C):
                col_c = acc_ref[pl.ds(c, b_blk, stride=C), :]        # (b_blk, 1)
                h = jnp.where(lane == c, col_c, h)
            h = h * inv_s                                            # spatial mean

            for i in range(num_layers):
                w = param_refs[2 * i][...]                           # (in_i, out_i) bf16
                b = param_refs[2 * i + 1][...]                       # (1, out_i)  f32
                h = jnp.dot(h.astype(w.dtype), w,
                            preferred_element_type=jnp.float32) + b
                if i < num_layers - 1:
                    h = jnp.maximum(h, 0.0)
            out_ref[...] = h.astype(out_ref.dtype)

    return kernel


@functools.partial(jax.jit, static_argnames=("max_block_bytes", "mlp_param_dtype"))
def ms_mlp_forward(x, weights, biases, *, max_block_bytes=8 * 1024 * 1024,
                   mlp_param_dtype=jnp.bfloat16):
    """Forward of MS_MLP (BN=False).

    x: (B, C, H, W) float.  weights[i]: (in_i, out_i) (transposed vs. PyTorch nn.Linear);
    biases[i]: (out_i,).  Returns (B, output_dim) float32.
    """
    B, C, H, W = x.shape
    S = H * W
    num_layers = len(weights)
    out_dim = int(weights[-1].shape[1])
    LANE = 128

    # x is streamed as-is (no pad, no dtype cast): a free row-major view (B*C, S).
    x2 = x.reshape(B * C, S)

    b_blk, s_blk = _choose_tiling(B, C, S, max_block_bytes, x2.dtype.itemsize)
    rows = b_blk * C
    n_rt = _cdiv(B, b_blk)
    n_s = _cdiv(S, s_blk)
    multi_step = n_s > 1
    ragged = (S % s_blk) != 0
    out_pad = _round_up(out_dim, LANE)                      # lane-dense output stores
    r_out = n_rt * b_blk

    # Small VMEM-resident params: weights bf16 (MXU fast path, f32 accumulate), biases f32;
    # the last layer is padded out to a 128-lane multiple.
    w_list = [w.astype(mlp_param_dtype) for w in weights]
    b_list = [b.reshape(1, -1).astype(jnp.float32) for b in biases]
    if out_pad != out_dim:
        w_last = jnp.zeros((w_list[-1].shape[0], out_pad), mlp_param_dtype)
        w_list[-1] = w_last.at[:, :out_dim].set(w_list[-1])
        b_list[-1] = jnp.zeros((1, out_pad), jnp.float32).at[:, :out_dim].set(b_list[-1])

    grid = (n_rt, n_s)
    in_specs = [pl.BlockSpec((rows, s_blk), lambda ri, si: (ri, si))]
    operands = [x2]
    resident = pl.BlockSpec(memory_space=pltpu.MemorySpace.VMEM)   # whole-array, single copy
    for w, b in zip(w_list, b_list):
        in_specs += [resident, resident]
        operands += [w, b]
    out_spec = pl.BlockSpec((b_blk, out_pad), lambda ri, si: (ri, 0))

    # Explicit VMEM budget: 2 x-buffers (double-buffered stream) + resident params + output
    # blocks + accumulator + slack.  The default block budget keeps this ~<24 MiB, so the same
    # tiling fits v5e/v6e (128 MiB) and v7x (64 MiB physical) VMEM.
    x_block_bytes = rows * s_blk * x2.dtype.itemsize
    param_bytes = sum(int(a.size) * a.dtype.itemsize for a in operands[1:])
    vmem_limit = (2 * x_block_bytes + param_bytes + 2 * b_blk * out_pad * 4
                  + rows * 512 + (2 << 20))
    vmem_limit = int(min(max(vmem_limit, 16 << 20), 128 << 20))

    flops = 2 * B * sum(int(w.shape[0]) * int(w.shape[1]) for w in w_list) + B * C * S
    bytes_accessed = int(x2.size) * x2.dtype.itemsize + param_bytes + r_out * out_pad * 4

    out_padded = pl.pallas_call(
        _make_ms_mlp_kernel(num_layers, b_blk, C, S, s_blk, multi_step, ragged),
        out_shape=jax.ShapeDtypeStruct((r_out, out_pad), jnp.float32),
        grid=grid,
        in_specs=in_specs,
        out_specs=out_spec,
        scratch_shapes=[pltpu.VMEM((rows, 1), jnp.float32)],        # per-batch-tile GAP sums
        compiler_params=pltpu.CompilerParams(
            dimension_semantics=("parallel", "arbitrary"),
            vmem_limit_bytes=vmem_limit),
        cost_estimate=pl.CostEstimate(flops=flops, transcendentals=0,
                                      bytes_accessed=bytes_accessed),
    )(*operands)

    return out_padded[:B, :out_dim]


def init_params(key, input_dim, hidden_dim, output_dim, num_layers):
    """Deterministic synthetic parameters matching nn.Linear shapes (BN=False)."""
    h = [hidden_dim] * (num_layers - 1)
    dims_in = [input_dim] + h
    dims_out = h + [output_dim]
    weights, biases = [], []
    for n, k in zip(dims_in, dims_out):
        key, wk, bk = jax.random.split(key, 3)
        bound = 1.0 / (n ** 0.5)
        # PyTorch stores weight as (out, in); we store the transpose (in, out).
        weights.append(jax.random.uniform(wk, (n, k), jnp.float32, -bound, bound))
        biases.append(jax.random.uniform(bk, (k,), jnp.float32, -bound, bound))
    return weights, biases


def ms_mlp_reference(x, weights, biases, *, mlp_param_dtype=None):
    """Plain-JAX forward.  With mlp_param_dtype=bf16 it mirrors the kernel's MXU numerics."""
    B, C, H, W = x.shape
    h = jnp.sum(x.reshape(B, C, -1).astype(jnp.float32), axis=-1) * (1.0 / (H * W))
    for i, (w, b) in enumerate(zip(weights, biases)):
        if mlp_param_dtype is not None:
            h = jnp.dot(h.astype(mlp_param_dtype), w.astype(mlp_param_dtype),
                        preferred_element_type=jnp.float32) + b
        else:
            h = h @ w + b
        if i < len(weights) - 1:
            h = jax.nn.relu(h)
    return h


if __name__ == "__main__":
    # Small shapes consistent with the module's forward (NCHW input).
    B, C, H, W = 2, 4, 16, 16
    input_dim, hidden_dim, output_dim, num_layers = C, 32, 8, 3

    key = jax.random.PRNGKey(0)
    key, xk = jax.random.split(key)
    x = jax.random.normal(xk, (B, C, H, W), jnp.float32)
    weights, biases = init_params(key, input_dim, hidden_dim, output_dim, num_layers)

    ref_matched = ms_mlp_reference(x, weights, biases, mlp_param_dtype=jnp.bfloat16)
    ref_f32 = ms_mlp_reference(x, weights, biases)

    # 1) Default tiling: single full-S spatial step (no accumulation pass).
    out = jax.block_until_ready(ms_mlp_forward(x, weights, biases))
    assert out.shape == (B, output_dim)
    assert jnp.allclose(out, ref_matched, atol=2e-3, rtol=2e-3), "mismatch vs matched ref"
    assert jnp.allclose(out, ref_f32, atol=3e-2, rtol=3e-2), "mismatch vs f32 reference"

    # 2) Force a tiny block budget to exercise the multi-spatial-step accumulator path.
    out_ms = jax.block_until_ready(
        ms_mlp_forward(x, weights, biases, max_block_bytes=4096))
    assert jnp.allclose(out_ms, ref_matched, atol=2e-3, rtol=2e-3), "multi-step mismatch"

    # 3) Ragged spatial extent (S not a multiple of the spatial block) to exercise the mask.
    xr = jax.random.normal(jax.random.PRNGKey(1), (B, C, 15, 15), jnp.float32)
    ref_r = ms_mlp_reference(xr, weights, biases, mlp_param_dtype=jnp.bfloat16)
    out_r = jax.block_until_ready(
        ms_mlp_forward(xr, weights, biases, max_block_bytes=4096))
    assert jnp.allclose(out_r, ref_r, atol=2e-3, rtol=2e-3), "ragged-tail mismatch"

    print("KERNEL_OK")
</pallas_src>

<mosaic_0001>
module attributes {stable_mosaic.version = 11 : i64} {
  func.func @kernel(%arg0: i32, %arg1: i32, %arg2: memref<8x256xf32, #tpu.memory_space<vmem>>, %arg3: memref<4x32xbf16, #tpu.memory_space<vmem>>, %arg4: memref<1x32xf32, #tpu.memory_space<vmem>>, %arg5: memref<32x32xbf16, #tpu.memory_space<vmem>>, %arg6: memref<1x32xf32, #tpu.memory_space<vmem>>, %arg7: memref<32x128xbf16, #tpu.memory_space<vmem>>, %arg8: memref<1x128xf32, #tpu.memory_space<vmem>>, %arg9: memref<2x128xf32, #tpu.memory_space<vmem>>, %arg10: memref<8x1xf32, #tpu.memory_space<vmem>>) attributes {dimension_semantics = [#tpu.dimension_semantics<parallel>, #tpu.dimension_semantics<arbitrary>], iteration_bounds = array<i64: 1, 1>, scalar_prefetch = 0 : i64, scratch_operands = 1 : i64, tpu.core_type = #tpu.core_type<tc>, window_params = [{transform_indices = @transform_0, window_bounds = array<i64: 8, 256>}, {pipeline_mode = #tpu.pipeline_mode<synchronous>, transform_indices = @transform_1, window_bounds = array<i64: 4, 32>}, {pipeline_mode = #tpu.pipeline_mode<synchronous>, transform_indices = @transform_2, window_bounds = array<i64: 1, 32>}, {pipeline_mode = #tpu.pipeline_mode<synchronous>, transform_indices = @transform_3, window_bounds = array<i64: 32, 32>}, {pipeline_mode = #tpu.pipeline_mode<synchronous>, transform_indices = @transform_4, window_bounds = array<i64: 1, 32>}, {pipeline_mode = #tpu.pipeline_mode<synchronous>, transform_indices = @transform_5, window_bounds = array<i64: 32, 128>}, {pipeline_mode = #tpu.pipeline_mode<synchronous>, transform_indices = @transform_6, window_bounds = array<i64: 1, 128>}, {transform_indices = @transform_7, window_bounds = array<i64: 2, 128>}]} {
    %c0 = arith.constant 0 : index
    %c0_0 = arith.constant 0 : index
    %0 = vector.load %arg2[%c0, %c0_0] : memref<8x256xf32, #tpu.memory_space<vmem>>, vector<8x256xf32>
    %cst = arith.constant dense<0.000000e+00> : vector<8xf32>
    %1 = vector.multi_reduction <add>, %0, %cst [1] : vector<8x256xf32> to vector<8xf32>
    %2 = vector.shape_cast %1 : vector<8xf32> to vector<8x1xf32>
    %c0_1 = arith.constant 0 : index
    %c0_2 = arith.constant 0 : index
    %3 = vector.load %arg10[%c0_1, %c0_2] : memref<8x1xf32, #tpu.memory_space<vmem>>, vector<8x1xf32>
    tpu.vector_store %arg10[%c0_1, %c0_2], %2 {strides = array<i32>} : memref<8x1xf32, #tpu.memory_space<vmem>>, vector<8x1xf32>,
    %c0_i32 = arith.constant 0 : i32
    %4 = arith.cmpi eq, %arg1, %c0_i32 : i32
    %5 = arith.extui %4 : i1 to i32
    %c0_i32_3 = arith.constant 0 : i32
    %6 = arith.cmpi ne, %5, %c0_i32_3 : i32
    scf.if %6 {
      %7 = tpu.iota {dimensions = array<i32: 1>} : vector<2x4xi32>
      %cst_4 = arith.constant 0.000000e+00 : f32
      %8 = vector.broadcast %cst_4 : f32 to vector<2x4xf32>
      %c0_5 = arith.constant 0 : index
      %c0_6 = arith.constant 0 : index
      %9 = tpu.strided_load %arg10[%c0_5, %c0_6] {strides = array<i32: 4, 1>} : memref<8x1xf32, #tpu.memory_space<vmem>>, vector<2x1xf32>
      %c0_i32_7 = arith.constant 0 : i32
      %10 = vector.broadcast %c0_i32_7 : i32 to vector<2x4xi32>
      %11 = arith.cmpi eq, %7, %10 : vector<2x4xi32>
      %12 = vector.shape_cast %9 : vector<2x1xf32> to vector<2x1xf32>
      %13 = vector.broadcast %12 : vector<2x1xf32> to vector<2x4xf32>
      %14 = arith.select %11, %13, %8 : vector<2x4xi1>, vector<2x4xf32>
      %c1 = arith.constant 1 : index
      %c0_8 = arith.constant 0 : index
      %15 = tpu.strided_load %arg10[%c1, %c0_8] {strides = array<i32: 4, 1>} : memref<8x1xf32, #tpu.memory_space<vmem>>, vector<2x1xf32>
      %c1_i32 = arith.constant 1 : i32
      %16 = vector.broadcast %c1_i32 : i32 to vector<2x4xi32>
      %17 = arith.cmpi eq, %7, %16 : vector<2x4xi32>
      %18 = vector.shape_cast %15 : vector<2x1xf32> to vector<2x1xf32>
      %19 = vector.broadcast %18 : vector<2x1xf32> to vector<2x4xf32>
      %20 = arith.select %17, %19, %14 : vector<2x4xi1>, vector<2x4xf32>
      %c2 = arith.constant 2 : index
      %c0_9 = arith.constant 0 : index
      %21 = tpu.strided_load %arg10[%c2, %c0_9] {strides = array<i32: 4, 1>} : memref<8x1xf32, #tpu.memory_space<vmem>>, vector<2x1xf32>
      %c2_i32 = arith.constant 2 : i32
      %22 = vector.broadcast %c2_i32 : i32 to vector<2x4xi32>
      %23 = arith.cmpi eq, %7, %22 : vector<2x4xi32>
      %24 = vector.shape_cast %21 : vector<2x1xf32> to vector<2x1xf32>
      %25 = vector.broadcast %24 : vector<2x1xf32> to vector<2x4xf32>
      %26 = arith.select %23, %25, %20 : vector<2x4xi1>, vector<2x4xf32>
      %c3 = arith.constant 3 : index
      %c0_10 = arith.constant 0 : index
      %27 = tpu.strided_load %arg10[%c3, %c0_10] {strides = array<i32: 4, 1>} : memref<8x1xf32, #tpu.memory_space<vmem>>, vector<2x1xf32>
      %c3_i32 = arith.constant 3 : i32
      %28 = vector.broadcast %c3_i32 : i32 to vector<2x4xi32>
      %29 = arith.cmpi eq, %7, %28 : vector<2x4xi32>
      %30 = vector.shape_cast %27 : vector<2x1xf32> to vector<2x1xf32>
      %31 = vector.broadcast %30 : vector<2x1xf32> to vector<2x4xf32>
      %32 = arith.select %29, %31, %26 : vector<2x4xi1>, vector<2x4xf32>
      %cst_11 = arith.constant 3.906250e-03 : f32
      %33 = vector.broadcast %cst_11 : f32 to vector<2x4xf32>
      %34 = arith.mulf %32, %33 : vector<2x4xf32>
      %c0_12 = arith.constant 0 : index
      %c0_13 = arith.constant 0 : index
      %35 = vector.load %arg3[%c0_12, %c0_13] : memref<4x32xbf16, #tpu.memory_space<vmem>>, vector<4x32xbf16>
      %c0_14 = arith.constant 0 : index
      %c0_15 = arith.constant 0 : index
      %36 = vector.load %arg4[%c0_14, %c0_15] : memref<1x32xf32, #tpu.memory_space<vmem>>, vector<1x32xf32>
      %37 = arith.truncf %34 : vector<2x4xf32> to vector<2x4xbf16>
      %cst_16 = arith.constant dense<0.000000e+00> : vector<2x32xf32>
      %38 = tpu.matmul %37, %35, %cst_16 {dimension_numbers = #tpu.dot_dimension_numbers<[1], [0], [0], [1], [0, 0, 1, 1], [], []>} : vector<2x4xbf16>, vector<4x32xbf16>, vector<2x32xf32> -> vector<2x32xf32>
      %39 = vector.broadcast %36 : vector<1x32xf32> to vector<2x32xf32>
      %40 = arith.addf %38, %39 : vector<2x32xf32>
      %cst_17 = arith.constant 0.000000e+00 : f32
      %41 = vector.broadcast %cst_17 : f32 to vector<2x32xf32>
      %42 = arith.maximumf %40, %41 : vector<2x32xf32>
      %c0_18 = arith.constant 0 : index
      %c0_19 = arith.constant 0 : index
      %43 = vector.load %arg5[%c0_18, %c0_19] : memref<32x32xbf16, #tpu.memory_space<vmem>>, vector<32x32xbf16>
      %c0_20 = arith.constant 0 : index
      %c0_21 = arith.constant 0 : index
      %44 = vector.load %arg6[%c0_20, %c0_21] : memref<1x32xf32, #tpu.memory_space<vmem>>, vector<1x32xf32>
      %45 = arith.truncf %42 : vector<2x32xf32> to vector<2x32xbf16>
      %cst_22 = arith.constant dense<0.000000e+00> : vector<2x32xf32>
      %46 = tpu.matmul %45, %43, %cst_22 {dimension_numbers = #tpu.dot_dimension_numbers<[1], [0], [0], [1], [0, 0, 1, 1], [], []>} : vector<2x32xbf16>, vector<32x32xbf16>, vector<2x32xf32> -> vector<2x32xf32>
      %47 = vector.broadcast %44 : vector<1x32xf32> to vector<2x32xf32>
      %48 = arith.addf %46, %47 : vector<2x32xf32>
      %cst_23 = arith.constant 0.000000e+00 : f32
      %49 = vector.broadcast %cst_23 : f32 to vector<2x32xf32>
      %50 = arith.maximumf %48, %49 : vector<2x32xf32>
      %c0_24 = arith.constant 0 : index
      %c0_25 = arith.constant 0 : index
      %51 = vector.load %arg7[%c0_24, %c0_25] : memref<32x128xbf16, #tpu.memory_space<vmem>>, vector<32x128xbf16>
      %c0_26 = arith.constant 0 : index
      %c0_27 = arith.constant 0 : index
      %52 = vector.load %arg8[%c0_26, %c0_27] : memref<1x128xf32, #tpu.memory_space<vmem>>, vector<1x128xf32>
      %53 = arith.truncf %50 : vector<2x32xf32> to vector<2x32xbf16>
      %cst_28 = arith.constant dense<0.000000e+00> : vector<2x128xf32>
      %54 = tpu.matmul %53, %51, %cst_28 {dimension_numbers = #tpu.dot_dimension_numbers<[1], [0], [0], [1], [0, 0, 1, 1], [], []>} : vector<2x32xbf16>, vector<32x128xbf16>, vector<2x128xf32> -> vector<2x128xf32>
      %55 = vector.broadcast %52 : vector<1x128xf32> to vector<2x128xf32>
      %56 = arith.addf %54, %55 : vector<2x128xf32>
      %c0_29 = arith.constant 0 : index
      %c0_30 = arith.constant 0 : index
      %57 = vector.load %arg9[%c0_29, %c0_30] : memref<2x128xf32, #tpu.memory_space<vmem>>, vector<2x128xf32>
      tpu.vector_store %arg9[%c0_29, %c0_30], %56 {strides = array<i32>} : memref<2x128xf32, #tpu.memory_space<vmem>>, vector<2x128xf32>,
    } else {
    }
    return
  }
  func.func @transform_0(%arg0: i32, %arg1: i32) -> (i32, i32) {
    %c0_i32 = arith.constant 0 : i32
    return %arg0, %arg1 : i32, i32
  }
  func.func @transform_1(%arg0: i32, %arg1: i32) -> (i32, i32) {
    %c0_i32 = arith.constant 0 : i32
    %c0_i32_0 = arith.constant 0 : i32
    %c0_i32_1 = arith.constant 0 : i32
    return %c0_i32, %c0_i32_0 : i32, i32
  }
  func.func @transform_2(%arg0: i32, %arg1: i32) -> (i32, i32) {
    %c0_i32 = arith.constant 0 : i32
    %c0_i32_0 = arith.constant 0 : i32
    %c0_i32_1 = arith.constant 0 : i32
    return %c0_i32, %c0_i32_0 : i32, i32
  }
  func.func @transform_3(%arg0: i32, %arg1: i32) -> (i32, i32) {
    %c0_i32 = arith.constant 0 : i32
    %c0_i32_0 = arith.constant 0 : i32
    %c0_i32_1 = arith.constant 0 : i32
    return %c0_i32, %c0_i32_0 : i32, i32
  }
  func.func @transform_4(%arg0: i32, %arg1: i32) -> (i32, i32) {
    %c0_i32 = arith.constant 0 : i32
    %c0_i32_0 = arith.constant 0 : i32
    %c0_i32_1 = arith.constant 0 : i32
    return %c0_i32, %c0_i32_0 : i32, i32
  }
  func.func @transform_5(%arg0: i32, %arg1: i32) -> (i32, i32) {
    %c0_i32 = arith.constant 0 : i32
    %c0_i32_0 = arith.constant 0 : i32
    %c0_i32_1 = arith.constant 0 : i32
    return %c0_i32, %c0_i32_0 : i32, i32
  }
  func.func @transform_6(%arg0: i32, %arg1: i32) -> (i32, i32) {
    %c0_i32 = arith.constant 0 : i32
    %c0_i32_0 = arith.constant 0 : i32
    %c0_i32_1 = arith.constant 0 : i32
    return %c0_i32, %c0_i32_0 : i32, i32
  }
  func.func @transform_7(%arg0: i32, %arg1: i32) -> (i32, i32) {
    %c0_i32 = arith.constant 0 : i32
    %c0_i32_0 = arith.constant 0 : i32
    return %arg0, %c0_i32 : i32, i32
  }
}

</mosaic_0001>

<llo_original>
// kernel: ms_mlp_forward.1
$region0: #{ms_mlp_forward.1}
  #allocation0 [shape = 'u32[]', space=smem, size = 0x4, offset = 0x4, fixed_abs, tag = 'smem constant byte address 0x4 - core index']
  #allocation1 [shape = 'u32[144,128]{1,0:T(1,128)}', space=vmem, size = 0x12000, scoped, tag = 'internal scratch']
  #allocation2 [shape = 'f32[8,1]{1,0:T(8,128)}', space=vmem, size = 0x1000, scoped, tag = 'scratch operand']
  %s0 = inlined_call_operand.vmem [shape: f32[8,256], index: 0, kind: input, shape index: {}]
  %s1 = inlined_call_operand.vmem [shape: bf16[4,32], index: 1, kind: input, shape index: {}]
  %s2 = inlined_call_operand.vmem [shape: f32[1,32], index: 2, kind: input, shape index: {}]
  %s3 = inlined_call_operand.vmem [shape: bf16[32,32], index: 3, kind: input, shape index: {}]
  %s4 = inlined_call_operand.vmem [shape: f32[1,32], index: 4, kind: input, shape index: {}]
  %s5 = inlined_call_operand.vmem [shape: bf16[32,128], index: 5, kind: input, shape index: {}]
  %s6 = inlined_call_operand.vmem [shape: f32[1,128], index: 6, kind: input, shape index: {}]
  %s7 = inlined_call_operand.hbm [shape: f32[2,128], index: 7, kind: output, shape index: {}]
  %s8 = sld [smem:[#allocation0]]
  $region42: #{ms_mlp_forward.1} parent=0
    _
  %s10 = ssub.s32 1, %s8
  %s11 = scalar_select 0, %s10, %s8
  $region1: #{ms_mlp_forward.1} parent=0
    #allocation3 [shape = 'u8[1024]{0}', space=vmem, size = 0x400, scoped, tag = 'output window, operand 0, single buffered']
    #allocation4 [shape = 's32[1]{0}', space=sflag, size = 0x4, scoped, tag = 'scoped memory for ms_mlp_forward.1']
    %12 = vsyncpa [#allocation4], 0
    // Predicated region
    $region2: #{ms_mlp_forward.1} parent=1 // pred_check
      _
    $region3: #{ms_mlp_forward.1} parent=1 // pred_check_branch
      %14 = sbr.rel (0) target = $region5
    $region4: #{ms_mlp_forward.1} parent=1 // pred_region
      _
    $region5: #{ms_mlp_forward.1} parent=1 // pred_fallthru
      _
    // Predicated region
    $region6: #{ms_mlp_forward.1} parent=1 // pred_check
      _
    $region7: #{ms_mlp_forward.1} parent=1 // pred_check_branch
      %16 = sbr.rel (0) target = $region9
    $region8: #{ms_mlp_forward.1} parent=1 // pred_region
      _
    $region9: #{ms_mlp_forward.1} parent=1 // pred_fallthru
      _
    // Predicated region
    $region10: #{ms_mlp_forward.1} parent=1 // pred_check
      _
    $region11: #{ms_mlp_forward.1} parent=1 // pred_check_branch
      %18 = sbr.rel (0) target = $region13
    $region12: #{ms_mlp_forward.1} parent=1 // pred_region
      _
    $region13: #{ms_mlp_forward.1} parent=1 // pred_fallthru
      _
    // Predicated region
    $region14: #{ms_mlp_forward.1} parent=1 // pred_check
      _
    $region15: #{ms_mlp_forward.1} parent=1 // pred_check_branch
      %20 = sbr.rel (0) target = $region17
    $region16: #{ms_mlp_forward.1} parent=1 // pred_region
      _
    $region17: #{ms_mlp_forward.1} parent=1 // pred_fallthru
      _
    // Predicated region
    $region18: #{ms_mlp_forward.1} parent=1 // pred_check
      _
    $region19: #{ms_mlp_forward.1} parent=1 // pred_check_branch
      %22 = sbr.rel (0) target = $region21
    $region20: #{ms_mlp_forward.1} parent=1 // pred_region
      _
    $region21: #{ms_mlp_forward.1} parent=1 // pred_fallthru
      _
    // Predicated region
    $region22: #{ms_mlp_forward.1} parent=1 // pred_check
      _
    $region23: #{ms_mlp_forward.1} parent=1 // pred_check_branch
      %24 = sbr.rel (0) target = $region25
    $region24: #{ms_mlp_forward.1} parent=1 // pred_region
      _
    $region25: #{ms_mlp_forward.1} parent=1 // pred_fallthru
      _
    // Predicated region
    $region26: #{ms_mlp_forward.1} parent=1 // pred_check
      _
    $region27: #{ms_mlp_forward.1} parent=1 // pred_check_branch
      %26 = sbr.rel (0) target = $region29
    $region28: #{ms_mlp_forward.1} parent=1 // pred_region
      _
    $region29: #{ms_mlp_forward.1} parent=1 // pred_fallthru
      _
    %v28 = vld [vmem:[%s0] sm:$0xff]
    %v29 = vld [vmem:[%s0 + $0x8] sm:$0xff]
    %v30 = vadd.f32 %v28, %v29
    %31 = vadd.xlane.f32.xlu0 %v30
    %v32 = vpop.xlane.xlu0 %31
    %vm33 = vcmask 7168
    %34 = vst.msk [vmem:[#allocation2] sm:$0xff] %vm33, %v32
    %p35 = scmp.eq.s32.totalorder 0, 0
    // Predicated region
    $region30: #{ms_mlp_forward.1} parent=1 // pred_check
      %p36 = pneg %p35
    $region31: #{ms_mlp_forward.1} parent=1 // pred_check_branch
      %38 = sbr.rel (%p36) target = $region33
    $region32: #{ms_mlp_forward.1} parent=1 // pred_region
      %v39 = vlaneseq
      %v40 = vand.u32 %v39, 127
      %v41 = vld [vmem:[#allocation2] ss:$4 sm:$0x3]
      %vm42 = vcmp.eq.s32.totalorder %v40, 0
      %44 = vset.pattern.permute.xlu0 0
      %45 = vperm.xlu0 %44, %v41
      %v46 = vpop.permute.xlu0 %45
      %v48 = vsel %vm42, %v46, 0.0
      %s49 = scalar_lea.vmem [#allocation2], 1
      %v50 = vld [vmem:[%s49] ss:$4 sm:$0x3]
      %vm51 = vcmp.eq.s32.totalorder %v40, 1
      %53 = vset.pattern.permute.xlu0 0
      %54 = vperm.xlu0 %53, %v50
      %v55 = vpop.permute.xlu0 %54
      %v57 = vsel %vm51, %v55, %v48
      %s58 = scalar_lea.vmem [#allocation2], 2
      %v59 = vld [vmem:[%s58] ss:$4 sm:$0x3]
      %vm60 = vcmp.eq.s32.totalorder %v40, 2
      %62 = vset.pattern.permute.xlu0 0
      %63 = vperm.xlu0 %62, %v59
      %v64 = vpop.permute.xlu0 %63
      %v66 = vsel %vm60, %v64, %v57
      %s67 = scalar_lea.vmem [#allocation2], 3
      %v68 = vld [vmem:[%s67] ss:$4 sm:$0x3]
      %vm69 = vcmp.eq.s32.totalorder %v40, 3
      %71 = vset.pattern.permute.xlu0 0
      %72 = vperm.xlu0 %71, %v68
      %v73 = vpop.permute.xlu0 %72
      %v75 = vsel %vm69, %v73, %v66
      %v76 = vmul.f32 %v75, 0.00390625
      %v77 = vld [vmem:[%s1] sm:$0x3]
      %v78 = vld [vmem:[%s2] sm:$0x1]
      %v79 = vpack.c.bf16 %v76, %v76
      %v81 = vlaneseq
      %v82 = vshrl.u32 %v81, 7
      %v83 = vsub.s32 0, %v82
      %v84 = vrot.slane %v78, %v83
      %vm86 = vcmask 31744
      %v88 = vsel %vm86, %v79, 0
      %vm90 = vcmask 1041408
      %v92 = vsel %vm90, %v77, 0
      %94 = vmatprep.subr.bf16.mxu0 0
      %95 = vmatpush1.bf16.msra.mxu0 0
      %96 = vmatprep.subr.bf16.mxu0 0
      %97 = vmatpush1.bf16.msra.mxu0 0
      %98 = vmatprep.subr.bf16.mxu0 0
      %99 = vmatpush1.bf16.msra.mxu0 0
      %100 = vmatprep.subr.bf16.mxu0 0
      %101 = vmatpush1.bf16.msra.mxu0 0
      %102 = vmatprep.subr.bf16.mxu0 0
      %103 = vmatpush1.bf16.msra.mxu0 0
      %104 = vmatprep.subr.bf16.mxu0 0
      %105 = vmatpush1.bf16.msra.mxu0 0
      %106 = vmatprep.subr.bf16.mxu0 0
      %107 = vmatpush1.bf16.msra.mxu0 0
      %108 = vmatprep.subr.bf16.mxu0 0
      %109 = vmatpush1.bf16.msra.mxu0 %v92
      %110 = vmatprep.subr.bf16.mxu0 0
      %111 = vmatpush2.bf16.msra.mxu0 0
      %112 = vmatprep.subr.bf16.mxu0 0
      %113 = vmatpush2.bf16.msra.mxu0 0
      %114 = vmatprep.subr.bf16.mxu0 0
      %115 = vmatpush2.bf16.msra.mxu0 0
      %116 = vmatprep.subr.bf16.mxu0 0
      %117 = vmatpush2.bf16.msra.mxu0 0
      %118 = vmatprep.subr.bf16.mxu0 0
      %119 = vmatpush2.bf16.msra.mxu0 0
      %120 = vmatprep.subr.bf16.mxu0 0
      %121 = vmatpush2.bf16.msra.mxu0 0
      %122 = vmatprep.subr.bf16.mxu0 0
      %123 = vmatpush2.bf16.msra.mxu0 0
      %124 = vmatprep.subr.bf16.mxu0 0
      %125 = vmatpush2.bf16.msra.mxu0 0
      %126 = vmatprep.mubr.bf16.mxu0 0
      %127 = vmatmul.mubr.bf16.gmra.mxu0 %v88
      %v128 = vpop.f32.mrf.mxu0
      %v129 = vadd.f32 %v84, %v128
      %v130 = vpop.f32.mrf.mxu0
      %v131 = vpop.f32.mrf.mxu0
      %v132 = vpop.f32.mrf.mxu0
      %133 = vdwg.mxu0
      %v134 = vmax.f32 %v129, 0.0
      %v135 = vld [vmem:[%s3] sm:$0xf]
      %v136 = vld [vmem:[%s3 + $0x4] sm:$0xf]
      %v137 = vld [vmem:[%s3 + $0x8] sm:$0xf]
      %v138 = vld [vmem:[%s3 + $0xc] sm:$0xf]
      %v139 = vld [vmem:[%s4] sm:$0x1]
      %v140 = vpack.c.bf16 %v134, %v134
      %v142 = vlaneseq
      %v143 = vshrl.u32 %v142, 7
      %v144 = vsub.s32 0, %v143
      %v145 = vrot.slane %v139, %v144
      %v151 = vunpack.c.l.b16 %v135
      %v152 = vunpack.c.l.b16 %v136
      %v153 = vunpack.c.l.b16 %v137
      %v154 = vunpack.c.l.b16 %v138
      %v155 = vpack.c.b16 %v152, %v151
      %v156 = vpack.c.b16 %v154, %v153
      %vm159 = vcmask 261120
      %v161 = vsel %vm159, %v140, 0
      %163 = vmatprep.subr.bf16.mxu0 0
      %164 = vmatpush1.bf16.msra.mxu0 0
      %165 = vmatprep.subr.bf16.mxu0 0
      %166 = vmatpush1.bf16.msra.mxu0 0
      %167 = vmatprep.subr.bf16.mxu0 0
      %168 = vmatpush1.bf16.msra.mxu0 0
      %169 = vmatprep.subr.bf16.mxu0 0
      %170 = vmatpush1.bf16.msra.mxu0 0
      %171 = vmatprep.subr.bf16.mxu0 0
      %172 = vmatpush1.bf16.msra.mxu0 0
      %173 = vmatprep.subr.bf16.mxu0 0
      %174 = vmatpush1.bf16.msra.mxu0 0
      %175 = vmatprep.subr.bf16.mxu0 0
      %176 = vmatpush1.bf16.msra.mxu0 %v156
      %177 = vmatprep.subr.bf16.mxu0 0
      %178 = vmatpush1.bf16.msra.mxu0 %v155
      %179 = vmatprep.subr.bf16.mxu0 0
      %180 = vmatpush2.bf16.msra.mxu0 0
      %181 = vmatprep.subr.bf16.mxu0 0
      %182 = vmatpush2.bf16.msra.mxu0 0
      %183 = vmatprep.subr.bf16.mxu0 0
      %184 = vmatpush2.bf16.msra.mxu0 0
      %185 = vmatprep.subr.bf16.mxu0 0
      %186 = vmatpush2.bf16.msra.mxu0 0
      %187 = vmatprep.subr.bf16.mxu0 0
      %188 = vmatpush2.bf16.msra.mxu0 0
      %189 = vmatprep.subr.bf16.mxu0 0
      %190 = vmatpush2.bf16.msra.mxu0 0
      %191 = vmatprep.subr.bf16.mxu0 0
      %192 = vmatpush2.bf16.msra.mxu0 0
      %193 = vmatprep.subr.bf16.mxu0 0
      %194 = vmatpush2.bf16.msra.mxu0 0
      %195 = vmatprep.mubr.bf16.mxu0 0
      %196 = vmatmul.mubr.bf16.gmra.mxu0 %v161
      %v197 = vpop.f32.mrf.mxu0
      %v198 = vadd.f32 %v145, %v197
      %v199 = vpop.f32.mrf.mxu0
      %v200 = vpop.f32.mrf.mxu0
      %v201 = vpop.f32.mrf.mxu0
      %202 = vdwg.mxu0
      %v203 = vmax.f32 %v198, 0.0
      %v204 = vld [vmem:[%s5] sm:$0xf]
      %v205 = vld [vmem:[%s5 + $0x4] sm:$0xf]
      %v206 = vld [vmem:[%s5 + $0x8] sm:$0xf]
      %v207 = vld [vmem:[%s5 + $0xc] sm:$0xf]
      %v208 = vld [vmem:[%s6] sm:$0x1]
      %v209 = vpack.c.bf16 %v203, %v203
      %v211 = vlaneseq
      %v212 = vshrl.u32 %v211, 7
      %v213 = vsub.s32 0, %v212
      %v214 = vrot.slane %v208, %v213
      %v220 = vunpack.c.l.b16 %v204
      %v221 = vunpack.c.l.b16 %v205
      %v222 = vunpack.c.l.b16 %v206
      %v223 = vunpack.c.l.b16 %v207
      %v224 = vpack.c.b16 %v221, %v220
      %v225 = vpack.c.b16 %v223, %v222
      %v229 = vsel %vm159, %v209, 0
      %231 = vmatprep.subr.bf16.mxu0 0
      %232 = vmatpush1.bf16.msra.mxu0 0
      %233 = vmatprep.subr.bf16.mxu0 0
      %234 = vmatpush1.bf16.msra.mxu0 0
      %235 = vmatprep.subr.bf16.mxu0 0
      %236 = vmatpush1.bf16.msra.mxu0 0
      %237 = vmatprep.subr.bf16.mxu0 0
      %238 = vmatpush1.bf16.msra.mxu0 0
      %239 = vmatprep.subr.bf16.mxu0 0
      %240 = vmatpush1.bf16.msra.mxu0 0
      %241 = vmatprep.subr.bf16.mxu0 0
      %242 = vmatpush1.bf16.msra.mxu0 0
      %243 = vmatprep.subr.bf16.mxu0 0
      %244 = vmatpush1.bf16.msra.mxu0 %v225
      %245 = vmatprep.subr.bf16.mxu0 0
      %246 = vmatpush1.bf16.msra.mxu0 %v224
      %247 = vmatprep.subr.bf16.mxu0 0
      %248 = vmatpush2.bf16.msra.mxu0 0
      %249 = vmatprep.subr.bf16.mxu0 0
      %250 = vmatpush2.bf16.msra.mxu0 0
      %251 = vmatprep.subr.bf16.mxu0 0
      %252 = vmatpush2.bf16.msra.mxu0 0
      %253 = vmatprep.subr.bf16.mxu0 0
      %254 = vmatpush2.bf16.msra.mxu0 0
      %255 = vmatprep.subr.bf16.mxu0 0
      %256 = vmatpush2.bf16.msra.mxu0 0
      %257 = vmatprep.subr.bf16.mxu0 0
      %258 = vmatpush2.bf16.msra.mxu0 0
      %259 = vmatprep.subr.bf16.mxu0 0
      %260 = vmatpush2.bf16.msra.mxu0 0
      %261 = vmatprep.subr.bf16.mxu0 0
      %262 = vmatpush2.bf16.msra.mxu0 0
      %263 = vmatprep.mubr.bf16.mxu0 0
      %264 = vmatmul.mubr.bf16.gmra.mxu0 %v229
      %v265 = vpop.f32.mrf.mxu0
      %v266 = vadd.f32 %v214, %v265
      %v267 = vpop.f32.mrf.mxu0
      %v268 = vpop.f32.mrf.mxu0
      %v269 = vpop.f32.mrf.mxu0
      %270 = vdwg.mxu0
      %271 = vst [vmem:[#allocation3] sm:$0x3] %v266
    $region33: #{ms_mlp_forward.1} parent=1 // pred_fallthru
      _
    // Predicated region
    $region34: #{ms_mlp_forward.1} parent=1 // pred_check
      _
    $region35: #{ms_mlp_forward.1} parent=1 // pred_check_branch
      %273 = sbr.rel (0) target = $region37
    $region36: #{ms_mlp_forward.1} parent=1 // pred_region
      %s275 = ssub.s32 32, 32
      %276 = vsyncadd [#allocation4], %s275
      %s278 = sshll.u32 [#allocation3], 4
      %s279 = int_to_ptr.vmem [resolvable:$true] %s278
      %281 = dma.vmem_to_hbm [thread:$0]  %s279, 32, %s7, [#allocation4]
    $region37: #{ms_mlp_forward.1} parent=1 // pred_fallthru
      _
    // Predicated region
    $region38: #{ms_mlp_forward.1} parent=1 // pred_check
      _
    $region39: #{ms_mlp_forward.1} parent=1 // pred_check_branch
      %283 = sbr.rel (0) target = $region41
    $region40: #{ms_mlp_forward.1} parent=1 // pred_region
      %284 = dma.done [#allocation4], 32
    $region41: #{ms_mlp_forward.1} parent=1 // pred_fallthru
      _
    %285 = vsyncpa [#allocation4], 1

</llo_original>
